<compile_context>
chip_gen: v6e
topology: v6e:2x2x1
jax: 0.10.0
libtpu: 0.0.40
codegen_flags: <defaults>
</compile_context>

<pallas_src>
import functools

import jax
import jax.numpy as jnp
from jax.experimental import pallas as pl
from jax.experimental.pallas import tpu as pltpu

_LANE = 128
_DIST_PAIR_TILE_BYTES = 16 * 1024 * 1024   # pm tile + sattn tile target per grid step
_CE_TILE_BYTES = 2 * 1024 * 1024


def _round_up(x, m):
    return ((x + m - 1) // m) * m


def _cdiv(a, b):
    return -(-a // b)


def _choose_row_blocks(rows, bytes_per_row, target_bytes, min_blocks=1, override=None):
    """Pick (rows_per_block, num_blocks, ragged_last).

    rows_per_block is a multiple of 8 unless it equals `rows` (full extent is always a
    legal sublane block).  `min_blocks=2` is used for the distance kernel so both v7x
    TensorCores get work whenever the array is large enough to split.
    """
    if override is not None:
        rb = min(int(override), rows)
    else:
        max_rb = max(8, (target_bytes // max(bytes_per_row, 1)) // 8 * 8)
        want = max(min_blocks, _cdiv(rows, max_rb))
        rb = min(max_rb, _round_up(_cdiv(rows, want), 8))
    if rb >= rows:
        return rows, 1, False
    return rb, _cdiv(rows, rb), (rows % rb) != 0


# --------------------------------------------------------------------------------------
# Kernels
# --------------------------------------------------------------------------------------
def _dist_partial_kernel(lidx_ref, pm_ref, sattn_ref, out_ref, *,
                         rows_valid_last, need_mask):
    """Grid step (i, l): scalar partial sum of pm * sattn[layers[l]] over one (rb, W) tile.

    pm_ref / sattn_ref : (rb, W) tiles in native dtype (product upcast once to f32)
    out_ref            : (L, 128) per-block partials; row l written at layer step l
                         (same scalar broadcast across lanes -> lane 0 read back in XLA).
    """
    del lidx_ref  # layer indices are only consumed by the index_maps
    l = pl.program_id(1)

    def _partial(masked_last):
        prod = (pm_ref[...] * sattn_ref[...]).astype(jnp.float32)  # native-dtype multiply
        if masked_last:  # only the last ragged block pays for iota + compare + select
            rid = jax.lax.broadcasted_iota(jnp.int32, prod.shape, 0)
            prod = jnp.where(rid < rows_valid_last, prod, jnp.float32(0.0))
        s = jnp.sum(prod).reshape(1, 1)
        return jnp.broadcast_to(s, (1, out_ref.shape[-1]))

    if need_mask:  # static flag: only emitted when the row count does not tile evenly
        last = pl.num_programs(0) - 1

        @pl.when(pl.program_id(0) != last)
        def _():
            out_ref[pl.ds(l, 1), :] = _partial(False)

        @pl.when(pl.program_id(0) == last)
        def _():
            out_ref[pl.ds(l, 1), :] = _partial(True)
    else:
        out_ref[pl.ds(l, 1), :] = _partial(False)


def _ce_kernel(logits_ref, labels_ref, out_ref, acc_ref, *, b_total, tb, need_mask):
    """Tiled CrossEntropyLoss (mean reduction).  Grid over row blocks of the batch.

    logits_ref : (tb, C) tile, labels_ref : (tb, 1) int32 tile.
    acc_ref    : SMEM (1,) f32 running sum of per-row (lse - picked).
    out_ref    : (1, 1) f32, written on the last grid step.
    """
    i = pl.program_id(0)

    @pl.when(i == 0)
    def _():
        acc_ref[0] = jnp.float32(0.0)

    logits = logits_ref[...].astype(jnp.float32)          # (tb, C)
    labels = labels_ref[...]                              # (tb, 1) int32
    rows, ncls = logits.shape

    if need_mask:  # static flag: only when B is not a multiple of the row block
        rid = i * tb + jax.lax.broadcasted_iota(jnp.int32, (rows, 1), 0)
        valid = rid < b_total
        logits = jnp.where(valid, logits, jnp.float32(0.0))

    m = jnp.max(logits, axis=-1, keepdims=True)                                   # (tb,1)
    lse = m + jnp.log(jnp.sum(jnp.exp(logits - m), axis=-1, keepdims=True))       # (tb,1)
    onehot = jax.lax.broadcasted_iota(jnp.int32, (rows, ncls), 1) == labels       # (tb,C)
    picked = jnp.sum(jnp.where(onehot, logits, jnp.float32(0.0)),
                     axis=-1, keepdims=True)                                      # (tb,1)
    contrib = lse - picked
    if need_mask:
        contrib = jnp.where(valid, contrib, jnp.float32(0.0))
    acc_ref[0] += jnp.sum(contrib)

    @pl.when(i == pl.num_programs(0) - 1)
    def _():
        out_ref[...] = (acc_ref[0] / jnp.float32(b_total)).reshape(1, 1)


# --------------------------------------------------------------------------------------
# Wrapper
# --------------------------------------------------------------------------------------
def arvit2d_multilayer_loss(logits, sattn, pm, labels,
                            layers=(0, 1, 2, 3, 4, 5),
                            lambdas=(0.002,) * 6,
                            *,
                            dist_block_rows=None,   # test knobs (multiples of 8)
                            ce_block_rows=None):
    """JAX glue around the Pallas kernels.

    logits: (B, C) float    -- preds[0]
    sattn:  (Ltot, B, S, S) -- preds[1] (stacked list of per-layer attention maps)
    pm:     (B, S, S)       -- preds[3]
    labels: (B,) int        -- label
    """
    assert len(layers) == len(lambdas), "layers and lambdas must have equal length"
    L = len(layers)
    Ltot = sattn.shape[0]

    # ---- distance term: tiled, pipelined multiply-reduce over (row blocks, layers) ----
    n_elems = int(pm.size)
    if n_elems % _LANE == 0:
        rows, W = n_elems // _LANE, _LANE            # optimal fully-flat lane-dense view
    elif pm.ndim >= 2:
        rows = int(pm.shape[0])                      # keep the batch axis as rows;
        W = n_elems // rows                          # last dim == full extent (no padding)
    else:
        # TODO(synk): 1-D, non-128-aligned pm falls back to a single wide row.
        rows, W = 1, n_elems

    pm_v = pm.reshape(1, rows, W)                    # free contiguous reshapes
    sattn_v = sattn.reshape(Ltot, rows, W)
    layer_idx = jnp.asarray(layers, dtype=jnp.int32)

    w_pad = _round_up(W, _LANE)
    itemsizes = pm.dtype.itemsize + sattn.dtype.itemsize
    rb, nb, need_mask = _choose_row_blocks(
        rows, w_pad * itemsizes, _DIST_PAIR_TILE_BYTES,
        min_blocks=2, override=dist_block_rows)
    rows_valid_last = rows - (nb - 1) * rb

    dist_kernel = functools.partial(
        _dist_partial_kernel, rows_valid_last=rows_valid_last, need_mask=need_mask)
    dist_vmem_limit = int(min(112 << 20,
                              max(32 << 20, 2 * rb * w_pad * itemsizes + (4 << 20))))

    partials = pl.pallas_call(
        dist_kernel,
        out_shape=jax.ShapeDtypeStruct((nb, L, _LANE), jnp.float32),
        grid_spec=pltpu.PrefetchScalarGridSpec(
            num_scalar_prefetch=1,
            grid=(nb, L),  # layer axis innermost -> pm tile resident across all L layers
            in_specs=[
                pl.BlockSpec((None, rb, W), lambda i, l, lidx: (0, i, 0)),        # pm
                pl.BlockSpec((None, rb, W), lambda i, l, lidx: (lidx[l], i, 0)),  # sattn
            ],
            out_specs=pl.BlockSpec((None, L, _LANE), lambda i, l, lidx: (i, 0, 0)),
        ),
        compiler_params=pltpu.CompilerParams(
            dimension_semantics=("parallel", "arbitrary"),
            vmem_limit_bytes=dist_vmem_limit,
        ),
        cost_estimate=pl.CostEstimate(
            flops=2 * L * rows * W,
            transcendentals=0,
            bytes_accessed=(rows * W * pm.dtype.itemsize
                            + L * rows * W * sattn.dtype.itemsize
                            + nb * L * _LANE * 4),
        ),
    )(layer_idx, pm_v, sattn_v)

    per_layer = jnp.sum(partials[:, :, 0], axis=0)                    # (L,)
    lam = jnp.asarray(lambdas, dtype=jnp.float32)
    ld = jnp.sum(lam * jnp.log(jnp.maximum(per_layer, jnp.float32(1.0))))

    # ---- classification term: batch-tiled CE kernel with SMEM accumulator ----
    B, C = logits.shape
    labels2d = labels.astype(jnp.int32).reshape(B, 1)
    c_pad = _round_up(C, _LANE)
    tb, nbc, ce_mask = _choose_row_blocks(
        B, c_pad * logits.dtype.itemsize, _CE_TILE_BYTES,
        min_blocks=1, override=ce_block_rows)
    ce_kernel = functools.partial(_ce_kernel, b_total=B, tb=tb, need_mask=ce_mask)
    ce_vmem_limit = int(min(112 << 20,
                            max(32 << 20,
                                2 * tb * (c_pad * logits.dtype.itemsize + _LANE * 4)
                                + (4 << 20))))

    ce = pl.pallas_call(
        ce_kernel,
        out_shape=jax.ShapeDtypeStruct((1, 1), jnp.float32),
        grid_spec=pltpu.PrefetchScalarGridSpec(
            num_scalar_prefetch=0,
            grid=(nbc,),
            in_specs=[pl.BlockSpec((tb, C), lambda i: (i, 0)),
                      pl.BlockSpec((tb, 1), lambda i: (i, 0))],
            out_specs=pl.BlockSpec((1, 1), lambda i: (0, 0)),
            scratch_shapes=[pltpu.SMEM((1,), jnp.float32)],
        ),
        compiler_params=pltpu.CompilerParams(
            dimension_semantics=("arbitrary",),
            vmem_limit_bytes=ce_vmem_limit,
        ),
    )(logits, labels2d)[0, 0]

    return ce + ld


# --------------------------------------------------------------------------------------
# Pure-JAX reference (for validation)
# --------------------------------------------------------------------------------------
def _reference(logits, sattn, pm, labels, layers, lambdas):
    logp = jax.nn.log_softmax(logits.astype(jnp.float32), axis=-1)
    ce = -jnp.mean(logp[jnp.arange(logits.shape[0]), labels])
    ld = 0.0
    for lam, l in zip(lambdas, layers):
        s = jnp.sum(pm.astype(jnp.float32) * sattn[l].astype(jnp.float32))
        ld = ld + lam * jnp.log(jnp.maximum(s, 1.0))
    return ce + ld


# --------------------------------------------------------------------------------------
# Self-test
# --------------------------------------------------------------------------------------
if __name__ == "__main__":
    def _make(key, B, C, S, Ltot, dtype):
        k1, k2, k3, k4 = jax.random.split(key, 4)
        logits = jax.random.normal(k1, (B, C), dtype=jnp.float32)
        sattn = jax.random.uniform(k2, (Ltot, B, S, S), dtype=jnp.float32).astype(dtype)
        pm = jax.random.uniform(k3, (B, S, S), dtype=jnp.float32).astype(dtype)
        labels = jax.random.randint(k4, (B,), 0, C, dtype=jnp.int32)
        return logits, sattn, pm, labels

    root = jax.random.PRNGKey(0)
    k_a, k_b, k_c, k_d = jax.random.split(root, 4)

    # Case 1: 128-aligned element count, all layers (module defaults), f32.
    layers1, lambdas1 = (0, 1, 2, 3, 4, 5), (0.002,) * 6
    lg, sa, pm, lb = _make(k_a, 2, 8, 16, 6, jnp.float32)
    got = jax.block_until_ready(arvit2d_multilayer_loss(lg, sa, pm, lb, layers1, lambdas1))
    ref = _reference(lg, sa, pm, lb, layers1, lambdas1)
    assert jnp.allclose(got, ref, rtol=1e-4, atol=1e-4), (got, ref)

    # Case 2: non-128-aligned element count (S=12) + layer subset -> (B, S*S) view path.
    layers2, lambdas2 = (0, 2, 4), (0.001, 0.002, 0.003)
    lg, sa, pm, lb = _make(k_b, 2, 5, 12, 6, jnp.float32)
    got = jax.block_until_ready(arvit2d_multilayer_loss(lg, sa, pm, lb, layers2, lambdas2))
    ref = _reference(lg, sa, pm, lb, layers2, lambdas2)
    assert jnp.allclose(got, ref, rtol=1e-4, atol=1e-4), (got, ref)

    # Case 3: bf16 attention maps, forced multi-block + ragged last block (mask path).
    layers3, lambdas3 = (1, 3, 5), (0.002, 0.002, 0.002)
    lg, sa, pm, lb = _make(k_c, 5, 8, 16, 6, jnp.bfloat16)
    got = jax.block_until_ready(
        arvit2d_multilayer_loss(lg, sa, pm, lb, layers3, lambdas3, dist_block_rows=8))
    ref = _reference(lg, sa, pm, lb, layers3, lambdas3)
    assert jnp.allclose(got, ref, rtol=1e-3, atol=1e-3), (got, ref)

    # Case 4: tiled CE with ragged last batch block + auto multi-block distance term.
    layers4, lambdas4 = (0, 1, 2, 3, 4, 5), (0.002,) * 6
    lg, sa, pm, lb = _make(k_d, 20, 10, 16, 6, jnp.float32)
    got = jax.block_until_ready(
        arvit2d_multilayer_loss(lg, sa, pm, lb, layers4, lambdas4, ce_block_rows=8))
    ref = _reference(lg, sa, pm, lb, layers4, lambdas4)
    assert jnp.allclose(got, ref, rtol=1e-4, atol=1e-4), (got, ref)

    print("KERNEL_OK")
</pallas_src>

<mosaic_0001>
module attributes {stable_mosaic.version = 11 : i64} {
  func.func @_dist_partial_kernel(%arg0: i32, %arg1: i32, %arg2: memref<6xi32, #tpu.memory_space<smem>>, %arg3: memref<1x4x128xf32, #tpu.memory_space<vmem>>, %arg4: memref<1x4x128xf32, #tpu.memory_space<vmem>>, %arg5: memref<1x6x128xf32, #tpu.memory_space<vmem>>) attributes {dimension_semantics = [#tpu.dimension_semantics<parallel>, #tpu.dimension_semantics<arbitrary>], iteration_bounds = array<i64: 1, 6>, scalar_prefetch = 1 : i64, scratch_operands = 0 : i64, tpu.core_type = #tpu.core_type<tc>, window_params = [{transform_indices = @transform_0, window_bounds = array<i64: 1, 4, 128>}, {transform_indices = @transform_1, window_bounds = array<i64: 1, 4, 128>}, {transform_indices = @transform_2, window_bounds = array<i64: 1, 6, 128>}]} {
    %c0 = arith.constant 0 : index
    %c0_0 = arith.constant 0 : index
    %c0_1 = arith.constant 0 : index
    %0 = vector.load %arg3[%c0, %c0_0, %c0_1] : memref<1x4x128xf32, #tpu.memory_space<vmem>>, vector<1x4x128xf32>
    %1 = vector.shape_cast %0 : vector<1x4x128xf32> to vector<4x128xf32>
    %c0_2 = arith.constant 0 : index
    %c0_3 = arith.constant 0 : index
    %c0_4 = arith.constant 0 : index
    %2 = vector.load %arg4[%c0_2, %c0_3, %c0_4] : memref<1x4x128xf32, #tpu.memory_space<vmem>>, vector<1x4x128xf32>
    %3 = vector.shape_cast %2 : vector<1x4x128xf32> to vector<4x128xf32>
    %4 = arith.mulf %1, %3 : vector<4x128xf32>
    %5 = vector.shape_cast %4 : vector<4x128xf32> to vector<1x4x128xf32>
    %cst = arith.constant dense<0.000000e+00> : vector<1xf32>
    %6 = vector.multi_reduction <add>, %5, %cst [1, 2] : vector<1x4x128xf32> to vector<1xf32>
    %7 = vector.shape_cast %6 : vector<1xf32> to vector<1x1x1xf32>
    %8 = vector.extract %7[0, 0, 0] : f32 from vector<1x1x1xf32>
    %9 = vector.broadcast %8 : f32 to vector<1x1xf32>
    %10 = vector.shape_cast %9 : vector<1x1xf32> to vector<1x1xf32>
    %11 = vector.broadcast %10 : vector<1x1xf32> to vector<1x128xf32>
    %c0_5 = arith.constant 0 : index
    %12 = arith.index_cast %arg1 : i32 to index
    %c0_6 = arith.constant 0 : index
    %13 = vector.load %arg5[%c0_5, %12, %c0_6] : memref<1x6x128xf32, #tpu.memory_space<vmem>>, vector<1x1x128xf32>
    %14 = vector.shape_cast %13 : vector<1x1x128xf32> to vector<1x128xf32>
    %15 = vector.shape_cast %11 : vector<1x128xf32> to vector<1x1x128xf32>
    tpu.vector_store %arg5[%c0_5, %12, %c0_6], %15 {strides = array<i32>} : memref<1x6x128xf32, #tpu.memory_space<vmem>>, vector<1x1x128xf32>,
    return
  }
  func.func @transform_0(%arg0: i32, %arg1: i32, %arg2: memref<6xi32, #tpu.memory_space<smem>>) -> (i32, i32, i32) {
    %c0_i32 = arith.constant 0 : i32
    %c0_i32_0 = arith.constant 0 : i32
    %c0_i32_1 = arith.constant 0 : i32
    return %c0_i32, %arg0, %c0_i32_0 : i32, i32, i32
  }
  func.func @transform_1(%arg0: i32, %arg1: i32, %arg2: memref<6xi32, #tpu.memory_space<smem>>) -> (i32, i32, i32) {
    %0 = arith.index_cast %arg1 : i32 to index
    %1 = memref.load %arg2[%0] : memref<6xi32, #tpu.memory_space<smem>>
    %c0_i32 = arith.constant 0 : i32
    %c0_i32_0 = arith.constant 0 : i32
    return %1, %arg0, %c0_i32 : i32, i32, i32
  }
  func.func @transform_2(%arg0: i32, %arg1: i32, %arg2: memref<6xi32, #tpu.memory_space<smem>>) -> (i32, i32, i32) {
    %c0_i32 = arith.constant 0 : i32
    %c0_i32_0 = arith.constant 0 : i32
    %c0_i32_1 = arith.constant 0 : i32
    return %arg0, %c0_i32, %c0_i32_0 : i32, i32, i32
  }
}

</mosaic_0001>

<llo_original>
// kernel: tpu_custom_call.1
$region0: #{tpu_custom_call.1}
  #allocation0 [shape = 'u32[]', space=smem, size = 0x4, offset = 0x4, fixed_abs, tag = 'smem constant byte address 0x4 - core index']
  #allocation1 [shape = 'u32[144,128]{1,0:T(1,128)}', space=vmem, size = 0x12000, scoped, tag = 'internal scratch']
  #allocation2 [shape = 's32[1]{0}', space=sflag, size = 0x4, scoped, tag = 'scoped memory for tpu_custom_call.1']
  #allocation3 [shape = 'u8[512]{0}', space=smem, size = 0x200, scoped, tag = 'prefetched SMEM operand 0']
  %s0 = inlined_call_operand.hbm [shape: s32[6], index: 0, kind: input, shape index: {}]
  %s1 = inlined_call_operand.hbm [shape: f32[1,4,128], index: 1, kind: input, shape index: {}]
  %s2 = inlined_call_operand.hbm [shape: f32[6,4,128], index: 2, kind: input, shape index: {}]
  %s3 = inlined_call_operand.vmem [shape: f32[1,6,128], index: 3, kind: output, shape index: {}]
  %s4 = sld [smem:[#allocation0]]
  $region49: #{tpu_custom_call.1} parent=0
    _
  %s6 = ssub.s32 1, %s4
  %s7 = scalar_select 0, %s6, %s4
  %9 = dma.hbm_to_smem %s0, 16, [#allocation3], [#allocation2]
  %10 = dma.done [#allocation2], 16
  %11 = sfence
  $region1: #{tpu_custom_call.1} parent=0
    #allocation4 [shape = 'u8[2048]{0}', space=vmem, size = 0x800, scoped, tag = 'input window, operand 1, single buffered']
    #allocation5 [shape = 's32[2]{0}', space=sflag, size = 0x8, scoped, tag = 'scoped memory for tpu_custom_call.1']
    #allocation6 [shape = 'u8[4096]{0}', space=vmem, size = 0x1000, scoped, tag = 'input window, operand 2']
    #allocation7 [shape = 's32[2]{0}', space=sflag, size = 0x8, scoped, tag = 'scoped memory for tpu_custom_call.1']
    %12 = vsyncpa [#allocation5], 0
    %13 = vsyncpa [#allocation7], 0
    %s14 = scalar_lea.sflag [#allocation7], 1
    %15 = vsyncpa %s14, 0
    loop: start=0, step=1, limit=8
    $region2: #{tpu_custom_call.1} parent=1 // loop_pre_header
      _
    $region3: #{tpu_custom_call.1} parent=1 // loop_header
      %s17 = sphi 0, %s21
      %p18 = scmp.ge.s32.totalorder %s17, 8
      %s24 = sphi 0, %s36
      %s25 = sphi 0, %s32
      %s26 = sphi 0, %s24
      %s27 = sphi 0, %s25
      %s28 = sphi 0, %s26
      %s29 = sphi 0, %s27
      %s39 = sphi 0, %s41
      %s42 = sphi 0, %s39
      %s43 = sphi 0, %s42
      %s59 = sphi 0, %s43
      %s69 = sphi 0, %s71
      %s72 = sphi 0, %s69
      %s73 = sphi 0, %s72
      %s89 = sphi 0, %s73
      %s95 = sphi 0, %s97
      %s98 = sphi 0, %s95
      %s99 = sphi 0, %s98
      %s115 = sphi 0, %s99
    $region4: #{tpu_custom_call.1} parent=1 // loop_header_branch
      %20 = sbr.rel (%p18) target = $region8
    $region5: #{tpu_custom_call.1} parent=1 // loop_body
      %s22 = ssub.s32 %s17, 1
      %s23 = ssub.s32 %s17, 2
      %s30 = sadd.s32 1, %s25
      %p31 = scmp.ge.s32.totalorder %s30, 6
      %s32 = scalar_select %p31, 0, %s30
      %s33 = sadd.s32 1, %s24
      %s34 = scalar_select %p31, %s33, %s24
      %p35 = scmp.ge.s32.totalorder %s34, 1
      %s36 = scalar_select %p35, 0, %s34
      %s37 = ssub.s32 %s24, %s36
      %p38 = scmp.eq.s32.totalorder %s37, 0
      %s40 = sadd.s32 %s39, 1
      %s41 = scalar_select %p38, %s39, %s40
      %p44 = pneg %p38
      %p45 = scmp.eq.s32.totalorder %s17, 5
      %p46 = por %p44, %p45
      %p47 = scmp.ne.s32.totalorder %s39, %s42
      %p48 = scmp.eq.s32.totalorder %s17, 0
      %p49 = por %p47, %p48
      %p50 = scmp.ne.s32.totalorder %s39, %s42
      %p51 = scmp.eq.s32.totalorder %s22, 5
      %p52 = por %p50, %p51
      %p53 = scmp.ne.s32.totalorder %s42, %s43
      %p54 = scmp.eq.s32.totalorder %s22, 0
      %p55 = por %p53, %p54
      %p56 = scmp.ne.s32.totalorder %s42, %s43
      %p57 = scmp.eq.s32.totalorder %s23, 5
      %p58 = por %p56, %p57
      %p60 = scmp.ne.s32.totalorder %s43, %s59
      %p61 = scmp.eq.s32.totalorder %s23, 0
      %p62 = por %p60, %p61
      %s63 = sld [smem:[#allocation3 + %s25]]
      %s64 = sld [smem:[#allocation3 + %s32]]
      %s65 = ssub.s32 %s63, %s64
      %s66 = ssub.s32 %s24, %s36
      %s67 = sor.u32 %s65, %s66
      %p68 = scmp.eq.s32.totalorder %s67, 0
      %s70 = sadd.s32 %s69, 1
      %s71 = scalar_select %p68, %s69, %s70
      %p74 = pneg %p68
      %p75 = scmp.eq.s32.totalorder %s17, 5
      %p76 = por %p74, %p75
      %p77 = scmp.ne.s32.totalorder %s69, %s72
      %p78 = scmp.eq.s32.totalorder %s17, 0
      %p79 = por %p77, %p78
      %p80 = scmp.ne.s32.totalorder %s69, %s72
      %p81 = scmp.eq.s32.totalorder %s22, 5
      %p82 = por %p80, %p81
      %p83 = scmp.ne.s32.totalorder %s72, %s73
      %p84 = scmp.eq.s32.totalorder %s22, 0
      %p85 = por %p83, %p84
      %p86 = scmp.ne.s32.totalorder %s72, %s73
      %p87 = scmp.eq.s32.totalorder %s23, 5
      %p88 = por %p86, %p87
      %p90 = scmp.ne.s32.totalorder %s73, %s89
      %p91 = scmp.eq.s32.totalorder %s23, 0
      %p92 = por %p90, %p91
      %s93 = ssub.s32 %s24, %s36
      %p94 = scmp.eq.s32.totalorder %s93, 0
      %s96 = sadd.s32 %s95, 1
      %s97 = scalar_select %p94, %s95, %s96
      %p100 = pneg %p94
      %p101 = scmp.eq.s32.totalorder %s17, 5
      %p102 = por %p100, %p101
      %p103 = scmp.ne.s32.totalorder %s95, %s98
      %p104 = scmp.eq.s32.totalorder %s17, 0
      %p105 = por %p103, %p104
      %p106 = scmp.ne.s32.totalorder %s95, %s98
      %p107 = scmp.eq.s32.totalorder %s22, 5
      %p108 = por %p106, %p107
      %p109 = scmp.ne.s32.totalorder %s98, %s99
      %p110 = scmp.eq.s32.totalorder %s22, 0
      %p111 = por %p109, %p110
      %p112 = scmp.ne.s32.totalorder %s98, %s99
      %p113 = scmp.eq.s32.totalorder %s23, 5
      %p114 = por %p112, %p113
      %p116 = scmp.ne.s32.totalorder %s99, %s115
      %p117 = scmp.eq.s32.totalorder %s23, 0
      %p118 = por %p116, %p117
      %p119 = scmp.le.s32.totalorder 1, %s17
      %p120 = scmp.lt.s32.totalorder %s17, 7
      %p121 = pnand %p119, %p120
      %p122 = pneg %p121
      // Predicated region
      $region9: #{tpu_custom_call.1} parent=5 // pred_check
        _
      $region10: #{tpu_custom_call.1} parent=5 // pred_check_branch
        %124 = sbr.rel (%p121) target = $region12
      $region11: #{tpu_custom_call.1} parent=5 // pred_region
        %s125 = ssub.s32 %s17, 1
        // Predicated region
        $region13: #{tpu_custom_call.1} parent=11 // pred_check
          %p126 = pneg %p55
        $region14: #{tpu_custom_call.1} parent=11 // pred_check_branch
          %128 = sbr.rel (%p126) target = $region16
        $region15: #{tpu_custom_call.1} parent=11 // pred_region
          %s130 = ssub.s32 64, 64
          %131 = vsyncadd [#allocation5], %s130
          %s132 = smul.addr %s26, 64
          %s133 = scalar_lea.hbm %s1, %s132
          %s135 = sshll.u32 [#allocation4], 4
          %s136 = int_to_ptr.vmem [resolvable:$true] %s135
          %138 = dma.hbm_to_vmem [thread:$0]  %s133, 64, %s136, [#allocation5]
        $region16: #{tpu_custom_call.1} parent=11 // pred_fallthru
          _
      $region12: #{tpu_custom_call.1} parent=5 // pred_fallthru
        _
      %p139 = scmp.lt.s32.totalorder %s17, 6
      // Predicated region
      $region17: #{tpu_custom_call.1} parent=5 // pred_check
        %p140 = pneg %p139
      $region18: #{tpu_custom_call.1} parent=5 // pred_check_branch
        %142 = sbr.rel (%p140) target = $region20
      $region19: #{tpu_custom_call.1} parent=5 // pred_region
        // Predicated region
        $region21: #{tpu_custom_call.1} parent=19 // pred_check
          %p143 = pneg %p79
        $region22: #{tpu_custom_call.1} parent=19 // pred_check_branch
          %145 = sbr.rel (%p143) target = $region24
        $region23: #{tpu_custom_call.1} parent=19 // pred_region
          %s146 = sand.u32 %s69, 1
          %s147 = scalar_lea.sflag [#allocation7], %s146
          %s148 = sand.u32 %s69, 1
          %s149 = smul.addr %s148, 4
          %s150 = scalar_lea.vmem [#allocation6], %s149
          %s151 = sld [smem:[#allocation3 + %s25]]
          %s153 = ssub.s32 64, 64
          %154 = vsyncadd %s147, %s153
          %s155 = sadd.s32 %s24, %s151
          %s156 = smul.addr %s155, 64
          %s157 = scalar_lea.hbm %s2, %s156
          %s159 = sshll.u32 %s150, 4
          %s160 = int_to_ptr.vmem [resolvable:$true] %s159
          %162 = dma.hbm_to_vmem [thread:$0]  %s157, 64, %s160, %s147
        $region24: #{tpu_custom_call.1} parent=19 // pred_fallthru
          _
      $region20: #{tpu_custom_call.1} parent=5 // pred_fallthru
        _
      %p163 = scmp.le.s32.totalorder 1, %s17
      %p164 = scmp.lt.s32.totalorder %s17, 7
      %p165 = pnand %p163, %p164
      %p166 = pneg %p165
      // Predicated region
      $region25: #{tpu_custom_call.1} parent=5 // pred_check
        _
      $region26: #{tpu_custom_call.1} parent=5 // pred_check_branch
        %168 = sbr.rel (%p165) target = $region28
      $region27: #{tpu_custom_call.1} parent=5 // pred_region
        %s169 = ssub.s32 %s17, 1
        // Predicated region
        $region29: #{tpu_custom_call.1} parent=27 // pred_check
          %p170 = pneg %p55
        $region30: #{tpu_custom_call.1} parent=27 // pred_check_branch
          %172 = sbr.rel (%p170) target = $region32
        $region31: #{tpu_custom_call.1} parent=27 // pred_region
          %173 = dma.done [#allocation5], 64
        $region32: #{tpu_custom_call.1} parent=27 // pred_fallthru
          _
        %s174 = sand.u32 %s72, 1
        %s175 = scalar_lea.sflag [#allocation7], %s174
        %s176 = sand.u32 %s72, 1
        %s177 = smul.addr %s176, 4
        %s178 = scalar_lea.vmem [#allocation6], %s177
        // Predicated region
        $region33: #{tpu_custom_call.1} parent=27 // pred_check
          %p179 = pneg %p85
        $region34: #{tpu_custom_call.1} parent=27 // pred_check_branch
          %181 = sbr.rel (%p179) target = $region36
        $region35: #{tpu_custom_call.1} parent=27 // pred_region
          %182 = dma.done %s175, 64
        $region36: #{tpu_custom_call.1} parent=27 // pred_fallthru
          _
        %p183 = pneg %p55
        %p184 = pneg %p52
        %s185 = sand.u32 %s72, 1
        %s186 = scalar_lea.sflag [#allocation7], %s185
        %s187 = sand.u32 %s72, 1
        %s188 = smul.addr %s187, 4
        %s189 = scalar_lea.vmem [#allocation6], %s188
        %p190 = pneg %p85
        %p191 = pneg %p82
        %p192 = pneg %p111
        %p193 = pneg %p108
        %p194 = scmp.lt.s32.totalorder %s26, 0
        %s195 = scalar_select %p194, %s26, 0
        %s196 = smul.addr %s195, 8
        %s197 = scalar_lea.vmem %s3, %s196
        %s198 = sld [smem:[#allocation3 + %s27]]
        %p199 = scmp.lt.s32.totalorder %s26, 0
        %s200 = scalar_select %p199, %s26, 0
        %s201 = smul.addr %s200, 8
        %s202 = scalar_lea.vmem %s3, %s201
        %v203 = vld [vmem:[#allocation4] sm:$0xf]
        %v204 = vld [vmem:[%s178] sm:$0xf]
        %v205 = vmul.f32 %v203, %v204
        %vm206 = vcmask 1043456
        %v207 = vsel %vm206, %v205, 0.0
        %208 = vadd.xlane.f32.xlu0 %v207
        %v209 = vpop.xlane.xlu0 %208
        %v210 = vrot.slane %v209, 4
        %v211 = vadd.f32 %v209, %v210
        %v212 = vrot.slane %v211, 2
        %v213 = vadd.f32 %v211, %v212
        %v214 = vrot.slane %v213, 1
        %v215 = vadd.f32 %v213, %v214
        %s216 = vtos %v215
        %v217 = vstv %s216
        %s218 = scalar_lea.vmem %s202, %s27
        %219 = vst [vmem:[%s218] sm:$0x1] %v217
        %p220 = scmp.lt.s32.totalorder %s26, 0
        %s221 = scalar_select %p220, %s26, 0
        %s222 = smul.addr %s221, 8
        %s223 = scalar_lea.vmem %s3, %s222
        // Predicated region
        $region37: #{tpu_custom_call.1} parent=27 // pred_check
          %p224 = pneg %p108
        $region38: #{tpu_custom_call.1} parent=27 // pred_check_branch
          %226 = sbr.rel (%p224) target = $region40
        $region39: #{tpu_custom_call.1} parent=27 // pred_region
          _
        $region40: #{tpu_custom_call.1} parent=27 // pred_fallthru
          _
        // Predicated region
        $region41: #{tpu_custom_call.1} parent=27 // pred_check
          %p227 = pneg %p108
        $region42: #{tpu_custom_call.1} parent=27 // pred_check_branch
          %229 = sbr.rel (%p227) target = $region44
        $region43: #{tpu_custom_call.1} parent=27 // pred_region
          %p230 = scmp.lt.s32.totalorder %s26, 0
          %s231 = scalar_select %p230, %s26, 0
          %s232 = smul.addr %s231, 8
          %s233 = scalar_lea.vmem %s3, %s232
        $region44: #{tpu_custom_call.1} parent=27 // pred_fallthru
          _
      $region28: #{tpu_custom_call.1} parent=5 // pred_fallthru
        _
      %p234 = scmp.le.s32.totalorder 2, %s17
      // Predicated region
      $region45: #{tpu_custom_call.1} parent=5 // pred_check
        %p235 = pneg %p234
      $region46: #{tpu_custom_call.1} parent=5 // pred_check_branch
        %237 = sbr.rel (%p235) target = $region48
      $region47: #{tpu_custom_call.1} parent=5 // pred_region
        %s238 = ssub.s32 %s17, 2
      $region48: #{tpu_custom_call.1} parent=5 // pred_fallthru
        _
    $region6: #{tpu_custom_call.1} parent=1 // loop_footer
      %s21 = sadd.s32 1, %s17
    $region7: #{tpu_custom_call.1} parent=1 // loop_footer_branch
      %16 = sbr.rel target = $region3
    $region8: #{tpu_custom_call.1} parent=1 // loop_exit
      _
    %239 = vsyncpa [#allocation5], 1
    %s240 = scalar_lea.sflag [#allocation5], 1
    %241 = vsyncpa %s240, 1
    %242 = vsyncpa [#allocation7], 1
    %s243 = scalar_lea.sflag [#allocation7], 1
    %244 = vsyncpa %s243, 1

</llo_original>
